<compile_context>
chip_gen: v6e
topology: v6e:2x2x1
jax: 0.10.0
libtpu: 0.0.40
codegen_flags: <defaults>
</compile_context>

<pallas_src>
import jax
import jax.numpy as jnp
from jax.experimental import pallas as pl
from jax.experimental.pallas import tpu as pltpu


def _round_up(n, m):
    return ((n + m - 1) // m) * m


def _pick_block_b(b_pad, requested):
    """Largest multiple of 128 that divides b_pad, is <= requested, and (when
    possible) leaves >= 2 grid steps so v7x megacore sharding has work to split."""
    n = b_pad // 128
    req = max(1, min(requested // 128, n))
    if n >= 2:
        req = min(req, max(1, n // 2))          # guarantee >= 2 grid steps
    for d in range(req, 0, -1):
        if n % d == 0:
            return d * 128
    return 128


def mlp_kernel(xt_ref, w1_ref, b1_ref, w2_ref, b2_ref, w3_ref, b3_ref, ot_ref):
    """Fused transposed-MLP tile.

    xt_ref : (Din, block_b)  f32   x^T, batch on the lane axis
    w1_ref : (H, Din)        f32
    b1_ref : (H, 1)          f32
    w2_ref : (H, H)          bf16
    b2_ref : (H, 1)          f32
    w3_ref : (H, 1)          f32   (pred weight, stored as a column)
    b3_ref : (1, 1)          f32
    ot_ref : (1, block_b)    f32   y^T, lane-dense along batch
    """
    din = w1_ref.shape[1]

    # ---- Layer 1 on the VPU: outer-product accumulate (K=3 would waste an
    # entire 128-deep MXU pass).  (H,1) lane-broadcast x (1,block_b) sublane-broadcast.
    acc = b1_ref[...] + w1_ref[:, 0:1] * xt_ref[0:1, :]
    for k in range(1, din):
        acc = acc + w1_ref[:, k:k + 1] * xt_ref[k:k + 1, :]
    h1 = jnp.maximum(acc, 0.0).astype(jnp.bfloat16)          # bf16 operand for the MXU

    # ---- Layer 2 on the MXU (128x128), f32 accumulation; bias/ReLU on the VPU in f32.
    h2 = jnp.dot(w2_ref[...], h1, preferred_element_type=jnp.float32) + b2_ref[...]
    h2 = jnp.maximum(h2, 0.0)

    # ---- Layer 3 (Dout=1) on the VPU: broadcast multiply + sublane reduce.
    y = jnp.sum(w3_ref[...] * h2, axis=0, keepdims=True) + b3_ref[...]
    ot_ref[...] = jnp.maximum(y, 0.0).astype(ot_ref.dtype)


def perf_model_forward(x, packed, *, block_b=4096):
    """x: (B, 3) float32.  packed: dict from pack_params().  Returns (B, 1) float32."""
    B, din = x.shape
    w1 = packed["w1"]            # (H, din)  f32
    b1 = packed["b1"]            # (H, 1)    f32
    w2 = packed["w2"]            # (H, H)    bf16
    b2 = packed["b2"]            # (H, 1)    f32
    w3 = packed["w3_col"]        # (H, 1)    f32
    b3 = packed["b3"]            # (1, 1)    f32
    H = w2.shape[0]
    dout = b3.shape[0]

    # Pad the batch only to lane granularity (128 / 256), not to a multiple of block_b.
    lane_pad = 256 if B > 256 else 128
    b_pad = _round_up(B, lane_pad)
    block_b = _pick_block_b(b_pad, block_b)
    grid = (b_pad // block_b,)

    # Batch on the lane axis: single transpose + pad, stays f32 (VPU layer-1 path).
    xt = x.T.astype(jnp.float32)
    if b_pad != B:
        xt = jnp.pad(xt, ((0, 0), (0, b_pad - B)))

    flops = 2 * b_pad * (H * din + H * H + H * dout)
    bytes_accessed = (xt.size * 4 + w1.size * 4 + b1.size * 4 + w2.size * 2
                      + b2.size * 4 + w3.size * 4 + b3.size * 4 + b_pad * dout * 4)

    # Per-step working set: ~1.5 KB of h1/h2/acc temps per batch element, plus
    # double-buffered xt/out tiles and the VMEM-resident weights.  Clamp so the
    # limit is always safe on v7x (64 MiB per core) and v5e.
    vmem_limit = block_b * 3 * 1024 + (6 << 20)
    vmem_limit = max(16 << 20, min(vmem_limit, 48 << 20))

    out_t = pl.pallas_call(
        mlp_kernel,
        out_shape=jax.ShapeDtypeStruct((dout, b_pad), jnp.float32),
        grid_spec=pltpu.PrefetchScalarGridSpec(
            num_scalar_prefetch=0,
            grid=grid,
            in_specs=[
                pl.BlockSpec((din, block_b), lambda i: (0, i)),  # x^T tile (lane-dense)
                pl.BlockSpec((H, din), lambda i: (0, 0)),        # W1 (f32, VPU path)
                pl.BlockSpec((H, 1), lambda i: (0, 0)),          # b1
                pl.BlockSpec((H, H), lambda i: (0, 0)),          # W2 (bf16, MXU)
                pl.BlockSpec((H, 1), lambda i: (0, 0)),          # b2
                pl.BlockSpec((H, 1), lambda i: (0, 0)),          # W3 column (f32, VPU)
                pl.BlockSpec((1, 1), lambda i: (0, 0)),          # b3
            ],
            out_specs=pl.BlockSpec((dout, block_b), lambda i: (0, i)),
        ),
        compiler_params=pltpu.CompilerParams(
            dimension_semantics=("parallel",),
            vmem_limit_bytes=int(vmem_limit),
        ),
        cost_estimate=pl.CostEstimate(
            flops=flops, transcendentals=0, bytes_accessed=bytes_accessed),
    )(xt, w1, b1, w2, b2, w3, b3)

    return out_t[:, :B].T                # (B, Dout) f32


def init_params(key, din=3, hidden=128, dout=1, dtype=jnp.float32):
    """torch.nn.Linear-style params: W is (out, in), b is (out,)."""
    ks = jax.random.split(key, 6)
    return {
        "w1": jax.random.normal(ks[0], (hidden, din), dtype) * 0.1,
        "b1": jax.random.normal(ks[1], (hidden,), dtype) * 0.1,
        "w2": jax.random.normal(ks[2], (hidden, hidden), dtype) * 0.1,
        "b2": jax.random.normal(ks[3], (hidden,), dtype) * 0.1,
        "w3": jax.random.normal(ks[4], (dout, hidden), dtype) * 0.1,
        "b3": jax.random.normal(ks[5], (dout,), dtype) * 0.1,
    }


def pack_params(p):
    """Pack torch-layout params for the transposed kernel.

    Only W2 (the 128x128 MXU matmul) is cast to bf16; layers 1 and 3 run on the
    VPU in f32, so their weights/biases stay f32 (better accuracy, negligible cost).
    """
    return {
        "w1": p["w1"].astype(jnp.float32),                 # (H, din)
        "b1": p["b1"][:, None].astype(jnp.float32),        # (H, 1)
        "w2": p["w2"].astype(jnp.bfloat16),                # (H, H)
        "b2": p["b2"][:, None].astype(jnp.float32),        # (H, 1)
        "w3_col": p["w3"].T.astype(jnp.float32),           # (H, 1)
        "b3": p["b3"][:, None].astype(jnp.float32),        # (1, 1)
    }


def reference_forward(x, p):
    """Pure-JAX f32 reference matching the PyTorch module semantics."""
    h1 = jnp.maximum(x @ p["w1"].T + p["b1"], 0.0)
    h2 = jnp.maximum(h1 @ p["w2"].T + p["b2"], 0.0)
    return jnp.maximum(h2 @ p["w3"].T + p["b3"], 0.0)


if __name__ == "__main__":
    key = jax.random.PRNGKey(0)
    kx, kp = jax.random.split(key)

    # Small, non-lane-aligned batch: exercises padding and (via the tile picker)
    # a multi-step pipelined grid (b_pad=512 -> block_b=256 -> grid=(2,)).
    B, Din = 500, 3
    x = jax.random.normal(kx, (B, Din), jnp.float32)
    params = init_params(kp)
    packed = pack_params(params)

    out = perf_model_forward(x, packed)
    out = jax.block_until_ready(out)

    ref = reference_forward(x, params)
    assert out.shape == (B, 1), out.shape
    # Only the layer-2 matmul uses bf16 operands (f32 accumulation) -> tight tolerance.
    assert jnp.allclose(out, ref, atol=3e-2, rtol=3e-2), \
        float(jnp.max(jnp.abs(out - ref)))
    print("KERNEL_OK")
</pallas_src>

<mosaic_0001>
module attributes {stable_mosaic.version = 11 : i64} {
  func.func @mlp_kernel(%arg0: i32, %arg1: memref<3x256xf32, #tpu.memory_space<vmem>>, %arg2: memref<128x3xf32, #tpu.memory_space<vmem>>, %arg3: memref<128x1xf32, #tpu.memory_space<vmem>>, %arg4: memref<128x128xbf16, #tpu.memory_space<vmem>>, %arg5: memref<128x1xf32, #tpu.memory_space<vmem>>, %arg6: memref<128x1xf32, #tpu.memory_space<vmem>>, %arg7: memref<1x1xf32, #tpu.memory_space<vmem>>, %arg8: memref<1x256xf32, #tpu.memory_space<vmem>>) attributes {dimension_semantics = [#tpu.dimension_semantics<parallel>], iteration_bounds = array<i64: 2>, scalar_prefetch = 0 : i64, scratch_operands = 0 : i64, tpu.core_type = #tpu.core_type<tc>, window_params = [{transform_indices = @transform_0, window_bounds = array<i64: 3, 256>}, {pipeline_mode = #tpu.pipeline_mode<synchronous>, transform_indices = @transform_1, window_bounds = array<i64: 128, 3>}, {pipeline_mode = #tpu.pipeline_mode<synchronous>, transform_indices = @transform_2, window_bounds = array<i64: 128, 1>}, {pipeline_mode = #tpu.pipeline_mode<synchronous>, transform_indices = @transform_3, window_bounds = array<i64: 128, 128>}, {pipeline_mode = #tpu.pipeline_mode<synchronous>, transform_indices = @transform_4, window_bounds = array<i64: 128, 1>}, {pipeline_mode = #tpu.pipeline_mode<synchronous>, transform_indices = @transform_5, window_bounds = array<i64: 128, 1>}, {pipeline_mode = #tpu.pipeline_mode<synchronous>, transform_indices = @transform_6, window_bounds = array<i64: 1, 1>}, {transform_indices = @transform_7, window_bounds = array<i64: 1, 256>}]} {
    %c0 = arith.constant 0 : index
    %c0_0 = arith.constant 0 : index
    %0 = vector.load %arg3[%c0, %c0_0] : memref<128x1xf32, #tpu.memory_space<vmem>>, vector<128x1xf32>
    %c0_1 = arith.constant 0 : index
    %c0_2 = arith.constant 0 : index
    %1 = vector.load %arg2[%c0_1, %c0_2] : memref<128x3xf32, #tpu.memory_space<vmem>>, vector<128x1xf32>
    %c0_3 = arith.constant 0 : index
    %c0_4 = arith.constant 0 : index
    %2 = vector.load %arg1[%c0_3, %c0_4] : memref<3x256xf32, #tpu.memory_space<vmem>>, vector<1x256xf32>
    %3 = vector.broadcast %1 : vector<128x1xf32> to vector<128x256xf32>
    %4 = vector.broadcast %2 : vector<1x256xf32> to vector<128x256xf32>
    %5 = arith.mulf %3, %4 : vector<128x256xf32>
    %6 = vector.broadcast %0 : vector<128x1xf32> to vector<128x256xf32>
    %7 = arith.addf %6, %5 : vector<128x256xf32>
    %c0_5 = arith.constant 0 : index
    %c1 = arith.constant 1 : index
    %8 = vector.load %arg2[%c0_5, %c1] : memref<128x3xf32, #tpu.memory_space<vmem>>, vector<128x1xf32>
    %c1_6 = arith.constant 1 : index
    %c0_7 = arith.constant 0 : index
    %9 = vector.load %arg1[%c1_6, %c0_7] : memref<3x256xf32, #tpu.memory_space<vmem>>, vector<1x256xf32>
    %10 = vector.broadcast %8 : vector<128x1xf32> to vector<128x256xf32>
    %11 = vector.broadcast %9 : vector<1x256xf32> to vector<128x256xf32>
    %12 = arith.mulf %10, %11 : vector<128x256xf32>
    %13 = arith.addf %7, %12 : vector<128x256xf32>
    %c0_8 = arith.constant 0 : index
    %c2 = arith.constant 2 : index
    %14 = vector.load %arg2[%c0_8, %c2] : memref<128x3xf32, #tpu.memory_space<vmem>>, vector<128x1xf32>
    %c2_9 = arith.constant 2 : index
    %c0_10 = arith.constant 0 : index
    %15 = vector.load %arg1[%c2_9, %c0_10] : memref<3x256xf32, #tpu.memory_space<vmem>>, vector<1x256xf32>
    %16 = vector.broadcast %14 : vector<128x1xf32> to vector<128x256xf32>
    %17 = vector.broadcast %15 : vector<1x256xf32> to vector<128x256xf32>
    %18 = arith.mulf %16, %17 : vector<128x256xf32>
    %19 = arith.addf %13, %18 : vector<128x256xf32>
    %cst = arith.constant 0.000000e+00 : f32
    %20 = vector.broadcast %cst : f32 to vector<128x256xf32>
    %21 = arith.maximumf %19, %20 : vector<128x256xf32>
    %22 = arith.truncf %21 : vector<128x256xf32> to vector<128x256xbf16>
    %c0_11 = arith.constant 0 : index
    %c0_12 = arith.constant 0 : index
    %23 = vector.load %arg4[%c0_11, %c0_12] : memref<128x128xbf16, #tpu.memory_space<vmem>>, vector<128x128xbf16>
    %cst_13 = arith.constant dense<0.000000e+00> : vector<128x256xf32>
    %24 = tpu.matmul %23, %22, %cst_13 {dimension_numbers = #tpu.dot_dimension_numbers<[1], [0], [0], [1], [0, 0, 1, 1], [], []>} : vector<128x128xbf16>, vector<128x256xbf16>, vector<128x256xf32> -> vector<128x256xf32>
    %c0_14 = arith.constant 0 : index
    %c0_15 = arith.constant 0 : index
    %25 = vector.load %arg5[%c0_14, %c0_15] : memref<128x1xf32, #tpu.memory_space<vmem>>, vector<128x1xf32>
    %26 = vector.broadcast %25 : vector<128x1xf32> to vector<128x256xf32>
    %27 = arith.addf %24, %26 : vector<128x256xf32>
    %cst_16 = arith.constant 0.000000e+00 : f32
    %28 = vector.broadcast %cst_16 : f32 to vector<128x256xf32>
    %29 = arith.maximumf %27, %28 : vector<128x256xf32>
    %c0_17 = arith.constant 0 : index
    %c0_18 = arith.constant 0 : index
    %30 = vector.load %arg6[%c0_17, %c0_18] : memref<128x1xf32, #tpu.memory_space<vmem>>, vector<128x1xf32>
    %31 = vector.broadcast %30 : vector<128x1xf32> to vector<128x256xf32>
    %32 = arith.mulf %31, %29 : vector<128x256xf32>
    %cst_19 = arith.constant dense<0.000000e+00> : vector<256xf32>
    %33 = vector.multi_reduction <add>, %32, %cst_19 [0] : vector<128x256xf32> to vector<256xf32>
    %34 = vector.shape_cast %33 : vector<256xf32> to vector<1x256xf32>
    %c0_20 = arith.constant 0 : index
    %c0_21 = arith.constant 0 : index
    %35 = vector.load %arg7[%c0_20, %c0_21] : memref<1x1xf32, #tpu.memory_space<vmem>>, vector<1x1xf32>
    %36 = vector.broadcast %35 : vector<1x1xf32> to vector<1x256xf32>
    %37 = arith.addf %34, %36 : vector<1x256xf32>
    %cst_22 = arith.constant 0.000000e+00 : f32
    %38 = vector.broadcast %cst_22 : f32 to vector<1x256xf32>
    %39 = arith.maximumf %37, %38 : vector<1x256xf32>
    %c0_23 = arith.constant 0 : index
    %c0_24 = arith.constant 0 : index
    %40 = vector.load %arg8[%c0_23, %c0_24] : memref<1x256xf32, #tpu.memory_space<vmem>>, vector<1x256xf32>
    tpu.vector_store %arg8[%c0_23, %c0_24], %39 {strides = array<i32>} : memref<1x256xf32, #tpu.memory_space<vmem>>, vector<1x256xf32>,
    return
  }
  func.func @transform_0(%arg0: i32) -> (i32, i32) {
    %c0_i32 = arith.constant 0 : i32
    %c0_i32_0 = arith.constant 0 : i32
    return %c0_i32, %arg0 : i32, i32
  }
  func.func @transform_1(%arg0: i32) -> (i32, i32) {
    %c0_i32 = arith.constant 0 : i32
    %c0_i32_0 = arith.constant 0 : i32
    %c0_i32_1 = arith.constant 0 : i32
    return %c0_i32, %c0_i32_0 : i32, i32
  }
  func.func @transform_2(%arg0: i32) -> (i32, i32) {
    %c0_i32 = arith.constant 0 : i32
    %c0_i32_0 = arith.constant 0 : i32
    %c0_i32_1 = arith.constant 0 : i32
    return %c0_i32, %c0_i32_0 : i32, i32
  }
  func.func @transform_3(%arg0: i32) -> (i32, i32) {
    %c0_i32 = arith.constant 0 : i32
    %c0_i32_0 = arith.constant 0 : i32
    %c0_i32_1 = arith.constant 0 : i32
    return %c0_i32, %c0_i32_0 : i32, i32
  }
  func.func @transform_4(%arg0: i32) -> (i32, i32) {
    %c0_i32 = arith.constant 0 : i32
    %c0_i32_0 = arith.constant 0 : i32
    %c0_i32_1 = arith.constant 0 : i32
    return %c0_i32, %c0_i32_0 : i32, i32
  }
  func.func @transform_5(%arg0: i32) -> (i32, i32) {
    %c0_i32 = arith.constant 0 : i32
    %c0_i32_0 = arith.constant 0 : i32
    %c0_i32_1 = arith.constant 0 : i32
    return %c0_i32, %c0_i32_0 : i32, i32
  }
  func.func @transform_6(%arg0: i32) -> (i32, i32) {
    %c0_i32 = arith.constant 0 : i32
    %c0_i32_0 = arith.constant 0 : i32
    %c0_i32_1 = arith.constant 0 : i32
    return %c0_i32, %c0_i32_0 : i32, i32
  }
  func.func @transform_7(%arg0: i32) -> (i32, i32) {
    %c0_i32 = arith.constant 0 : i32
    %c0_i32_0 = arith.constant 0 : i32
    return %c0_i32, %arg0 : i32, i32
  }
}

</mosaic_0001>

<llo_original>
// kernel: tpu_custom_call.1
$region0: #{tpu_custom_call.1}
  #allocation0 [shape = 'u32[]', space=smem, size = 0x4, offset = 0x4, fixed_abs, tag = 'smem constant byte address 0x4 - core index']
  #allocation1 [shape = 'u32[144,128]{1,0:T(1,128)}', space=vmem, size = 0x12000, scoped, tag = 'internal scratch']
  #allocation2 [shape = 'f32[1,1]{1,0:T(1,128)S(1)}', space=vmem, size = 0x200, scoped, tag = 'scoped memory for tpu_custom_call.1']
  %s0 = inlined_call_operand.vmem [shape: f32[3,512], index: 0, kind: input, shape index: {}]
  %s1 = inlined_call_operand.vmem [shape: f32[128,3], index: 1, kind: input, shape index: {}]
  %s2 = inlined_call_operand.vmem [shape: f32[128,1], index: 2, kind: input, shape index: {}]
  %s3 = inlined_call_operand.vmem [shape: bf16[128,128], index: 3, kind: input, shape index: {}]
  %s4 = inlined_call_operand.vmem [shape: f32[128,1], index: 4, kind: input, shape index: {}]
  %s5 = inlined_call_operand.vmem [shape: f32[128,1], index: 5, kind: input, shape index: {}]
  %s6 = inlined_call_operand.<no memory space> [shape: f32[1,1], index: 6, kind: input, shape index: {}]
  %s7 = inlined_call_operand.hbm [shape: f32[1,512], index: 7, kind: output, shape index: {}]
  %s8 = sld [smem:[#allocation0]]
  $region61: #{tpu_custom_call.1} parent=0
    _
  %s10 = ssub.s32 1, %s8
  %s11 = scalar_select 0, %s10, %s8
  %v12 = vstv %s6
  %13 = vst [vmem:[#allocation2] sm:$0x1] %v12
  $region1: #{tpu_custom_call.1} parent=0
    #allocation3 [shape = 'u8[2048]{0}', space=vmem, size = 0x800, scoped, tag = 'output window, operand 0']
    #allocation4 [shape = 's32[2]{0}', space=sflag, size = 0x8, scoped, tag = 'scoped memory for tpu_custom_call.1']
    %14 = vsyncpa [#allocation4], 0
    %s15 = scalar_lea.sflag [#allocation4], 1
    %16 = vsyncpa %s15, 0
    loop: start=0, step=1, limit=4
    $region2: #{tpu_custom_call.1} parent=1 // loop_pre_header
      _
    $region3: #{tpu_custom_call.1} parent=1 // loop_header
      %s18 = sphi 0, %s22
      %p19 = scmp.ge.s32.totalorder %s18, 4
      %s28 = sphi 0, %s30
      %s31 = sphi 0, %s28
      %s32 = sphi 0, %s31
      %s48 = sphi 0, %s32
      %s52 = sphi 0, %s52
      %s54 = sphi 0, %s52
      %s55 = sphi 0, %s54
      %s69 = sphi 0, %s55
      %s73 = sphi 0, %s73
      %s75 = sphi 0, %s73
      %s76 = sphi 0, %s75
      %s90 = sphi 0, %s76
      %s94 = sphi 0, %s94
      %s96 = sphi 0, %s94
      %s97 = sphi 0, %s96
      %s111 = sphi 0, %s97
      %s115 = sphi 0, %s115
      %s117 = sphi 0, %s115
      %s118 = sphi 0, %s117
      %s132 = sphi 0, %s118
      %s136 = sphi 0, %s136
      %s138 = sphi 0, %s136
      %s139 = sphi 0, %s138
      %s153 = sphi 0, %s139
      %s157 = sphi 0, %s157
      %s159 = sphi 0, %s157
      %s160 = sphi 0, %s159
      %s174 = sphi 0, %s160
      %s180 = sphi 0, %s182
      %s183 = sphi 0, %s180
      %s184 = sphi 0, %s183
      %s200 = sphi 0, %s184
    $region4: #{tpu_custom_call.1} parent=1 // loop_header_branch
      %21 = sbr.rel (%p19) target = $region8
    $region5: #{tpu_custom_call.1} parent=1 // loop_body
      %s23 = ssub.s32 %s18, 1
      %s24 = ssub.s32 %s18, 2
      %s25 = sadd.s32 %s18, 1
      %s26 = ssub.s32 %s18, %s25
      %p27 = scmp.eq.s32.totalorder %s26, 0
      %s29 = sadd.s32 %s28, 1
      %s30 = scalar_select %p27, %s28, %s29
      %p33 = pneg %p27
      %p34 = scmp.eq.s32.totalorder %s18, 1
      %p35 = por %p33, %p34
      %p36 = scmp.ne.s32.totalorder %s28, %s31
      %p37 = scmp.eq.s32.totalorder %s18, 0
      %p38 = por %p36, %p37
      %p39 = scmp.ne.s32.totalorder %s28, %s31
      %p40 = scmp.eq.s32.totalorder %s23, 1
      %p41 = por %p39, %p40
      %p42 = scmp.ne.s32.totalorder %s31, %s32
      %p43 = scmp.eq.s32.totalorder %s23, 0
      %p44 = por %p42, %p43
      %p45 = scmp.ne.s32.totalorder %s31, %s32
      %p46 = scmp.eq.s32.totalorder %s24, 1
      %p47 = por %p45, %p46
      %p49 = scmp.ne.s32.totalorder %s32, %s48
      %p50 = scmp.eq.s32.totalorder %s24, 0
      %p51 = por %p49, %p50
      %s53 = sadd.s32 %s52, 1
      %p56 = scmp.eq.s32.totalorder %s18, 1
      %p57 = scmp.ne.s32.totalorder %s52, %s54
      %p58 = scmp.eq.s32.totalorder %s18, 0
      %p59 = por %p57, %p58
      %p60 = scmp.ne.s32.totalorder %s52, %s54
      %p61 = scmp.eq.s32.totalorder %s23, 1
      %p62 = por %p60, %p61
      %p63 = scmp.ne.s32.totalorder %s54, %s55
      %p64 = scmp.eq.s32.totalorder %s23, 0
      %p65 = por %p63, %p64
      %p66 = scmp.ne.s32.totalorder %s54, %s55
      %p67 = scmp.eq.s32.totalorder %s24, 1
      %p68 = por %p66, %p67
      %p70 = scmp.ne.s32.totalorder %s55, %s69
      %p71 = scmp.eq.s32.totalorder %s24, 0
      %p72 = por %p70, %p71
      %s74 = sadd.s32 %s73, 1
      %p77 = scmp.eq.s32.totalorder %s18, 1
      %p78 = scmp.ne.s32.totalorder %s73, %s75
      %p79 = scmp.eq.s32.totalorder %s18, 0
      %p80 = por %p78, %p79
      %p81 = scmp.ne.s32.totalorder %s73, %s75
      %p82 = scmp.eq.s32.totalorder %s23, 1
      %p83 = por %p81, %p82
      %p84 = scmp.ne.s32.totalorder %s75, %s76
      %p85 = scmp.eq.s32.totalorder %s23, 0
      %p86 = por %p84, %p85
      %p87 = scmp.ne.s32.totalorder %s75, %s76
      %p88 = scmp.eq.s32.totalorder %s24, 1
      %p89 = por %p87, %p88
      %p91 = scmp.ne.s32.totalorder %s76, %s90
      %p92 = scmp.eq.s32.totalorder %s24, 0
      %p93 = por %p91, %p92
      %s95 = sadd.s32 %s94, 1
      %p98 = scmp.eq.s32.totalorder %s18, 1
      %p99 = scmp.ne.s32.totalorder %s94, %s96
      %p100 = scmp.eq.s32.totalorder %s18, 0
      %p101 = por %p99, %p100
      %p102 = scmp.ne.s32.totalorder %s94, %s96
      %p103 = scmp.eq.s32.totalorder %s23, 1
      %p104 = por %p102, %p103
      %p105 = scmp.ne.s32.totalorder %s96, %s97
      %p106 = scmp.eq.s32.totalorder %s23, 0
      %p107 = por %p105, %p106
      %p108 = scmp.ne.s32.totalorder %s96, %s97
      %p109 = scmp.eq.s32.totalorder %s24, 1
      %p110 = por %p108, %p109
      %p112 = scmp.ne.s32.totalorder %s97, %s111
      %p113 = scmp.eq.s32.totalorder %s24, 0
      %p114 = por %p112, %p113
      %s116 = sadd.s32 %s115, 1
      %p119 = scmp.eq.s32.totalorder %s18, 1
      %p120 = scmp.ne.s32.totalorder %s115, %s117
      %p121 = scmp.eq.s32.totalorder %s18, 0
      %p122 = por %p120, %p121
      %p123 = scmp.ne.s32.totalorder %s115, %s117
      %p124 = scmp.eq.s32.totalorder %s23, 1
      %p125 = por %p123, %p124
      %p126 = scmp.ne.s32.totalorder %s117, %s118
      %p127 = scmp.eq.s32.totalorder %s23, 0
      %p128 = por %p126, %p127
      %p129 = scmp.ne.s32.totalorder %s117, %s118
      %p130 = scmp.eq.s32.totalorder %s24, 1
      %p131 = por %p129, %p130
      %p133 = scmp.ne.s32.totalorder %s118, %s132
      %p134 = scmp.eq.s32.totalorder %s24, 0
      %p135 = por %p133, %p134
      %s137 = sadd.s32 %s136, 1
      %p140 = scmp.eq.s32.totalorder %s18, 1
      %p141 = scmp.ne.s32.totalorder %s136, %s138
      %p142 = scmp.eq.s32.totalorder %s18, 0
      %p143 = por %p141, %p142
      %p144 = scmp.ne.s32.totalorder %s136, %s138
      %p145 = scmp.eq.s32.totalorder %s23, 1
      %p146 = por %p144, %p145
      %p147 = scmp.ne.s32.totalorder %s138, %s139
      %p148 = scmp.eq.s32.totalorder %s23, 0
      %p149 = por %p147, %p148
      %p150 = scmp.ne.s32.totalorder %s138, %s139
      %p151 = scmp.eq.s32.totalorder %s24, 1
      %p152 = por %p150, %p151
      %p154 = scmp.ne.s32.totalorder %s139, %s153
      %p155 = scmp.eq.s32.totalorder %s24, 0
      %p156 = por %p154, %p155
      %s158 = sadd.s32 %s157, 1
      %p161 = scmp.eq.s32.totalorder %s18, 1
      %p162 = scmp.ne.s32.totalorder %s157, %s159
      %p163 = scmp.eq.s32.totalorder %s18, 0
      %p164 = por %p162, %p163
      %p165 = scmp.ne.s32.totalorder %s157, %s159
      %p166 = scmp.eq.s32.totalorder %s23, 1
      %p167 = por %p165, %p166
      %p168 = scmp.ne.s32.totalorder %s159, %s160
      %p169 = scmp.eq.s32.totalorder %s23, 0
      %p170 = por %p168, %p169
      %p171 = scmp.ne.s32.totalorder %s159, %s160
      %p172 = scmp.eq.s32.totalorder %s24, 1
      %p173 = por %p171, %p172
      %p175 = scmp.ne.s32.totalorder %s160, %s174
      %p176 = scmp.eq.s32.totalorder %s24, 0
      %p177 = por %p175, %p176
      %s178 = ssub.s32 %s18, %s25
      %p179 = scmp.eq.s32.totalorder %s178, 0
      %s181 = sadd.s32 %s180, 1
      %s182 = scalar_select %p179, %s180, %s181
      %p185 = pneg %p179
      %p186 = scmp.eq.s32.totalorder %s18, 1
      %p187 = por %p185, %p186
      %p188 = scmp.ne.s32.totalorder %s180, %s183
      %p189 = scmp.eq.s32.totalorder %s18, 0
      %p190 = por %p188, %p189
      %p191 = scmp.ne.s32.totalorder %s180, %s183
      %p192 = scmp.eq.s32.totalorder %s23, 1
      %p193 = por %p191, %p192
      %p194 = scmp.ne.s32.totalorder %s183, %s184
      %p195 = scmp.eq.s32.totalorder %s23, 0
      %p196 = por %p194, %p195
      %p197 = scmp.ne.s32.totalorder %s183, %s184
      %p198 = scmp.eq.s32.totalorder %s24, 1
      %p199 = por %p197, %p198
      %p201 = scmp.ne.s32.totalorder %s184, %s200
      %p202 = scmp.eq.s32.totalorder %s24, 0
      %p203 = por %p201, %p202
      %p204 = scmp.le.s32.totalorder 1, %s18
      %p205 = scmp.lt.s32.totalorder %s18, 3
      %p206 = pnand %p204, %p205
      %p207 = pneg %p206
      // Predicated region
      $region9: #{tpu_custom_call.1} parent=5 // pred_check
        _
      $region10: #{tpu_custom_call.1} parent=5 // pred_check_branch
        %209 = sbr.rel (%p206) target = $region12
      $region11: #{tpu_custom_call.1} parent=5 // pred_region
        %s210 = ssub.s32 %s18, 1
        // Predicated region
        $region13: #{tpu_custom_call.1} parent=11 // pred_check
          %p211 = pneg %p65
        $region14: #{tpu_custom_call.1} parent=11 // pred_check_branch
          %213 = sbr.rel (%p211) target = $region16
        $region15: #{tpu_custom_call.1} parent=11 // pred_region
          _
        $region16: #{tpu_custom_call.1} parent=11 // pred_fallthru
          _
        // Predicated region
        $region17: #{tpu_custom_call.1} parent=11 // pred_check
          %p214 = pneg %p86
        $region18: #{tpu_custom_call.1} parent=11 // pred_check_branch
          %216 = sbr.rel (%p214) target = $region20
        $region19: #{tpu_custom_call.1} parent=11 // pred_region
          _
        $region20: #{tpu_custom_call.1} parent=11 // pred_fallthru
          _
        // Predicated region
        $region21: #{tpu_custom_call.1} parent=11 // pred_check
          %p217 = pneg %p107
        $region22: #{tpu_custom_call.1} parent=11 // pred_check_branch
          %219 = sbr.rel (%p217) target = $region24
        $region23: #{tpu_custom_call.1} parent=11 // pred_region
          _
        $region24: #{tpu_custom_call.1} parent=11 // pred_fallthru
          _
        // Predicated region
        $region25: #{tpu_custom_call.1} parent=11 // pred_check
          %p220 = pneg %p128
        $region26: #{tpu_custom_call.1} parent=11 // pred_check_branch
          %222 = sbr.rel (%p220) target = $region28
        $region27: #{tpu_custom_call.1} parent=11 // pred_region
          _
        $region28: #{tpu_custom_call.1} parent=11 // pred_fallthru
          _
        // Predicated region
        $region29: #{tpu_custom_call.1} parent=11 // pred_check
          %p223 = pneg %p149
        $region30: #{tpu_custom_call.1} parent=11 // pred_check_branch
          %225 = sbr.rel (%p223) target = $region32
        $region31: #{tpu_custom_call.1} parent=11 // pred_region
          _
        $region32: #{tpu_custom_call.1} parent=11 // pred_fallthru
          _
        // Predicated region
        $region33: #{tpu_custom_call.1} parent=11 // pred_check
          %p226 = pneg %p170
        $region34: #{tpu_custom_call.1} parent=11 // pred_check_branch
          %228 = sbr.rel (%p226) target = $region36
        $region35: #{tpu_custom_call.1} parent=11 // pred_region
          _
        $region36: #{tpu_custom_call.1} parent=11 // pred_fallthru
          _
      $region12: #{tpu_custom_call.1} parent=5 // pred_fallthru
        _
      %p229 = scmp.lt.s32.totalorder %s18, 2
      // Predicated region
      $region37: #{tpu_custom_call.1} parent=5 // pred_check
        %p230 = pneg %p229
      $region38: #{tpu_custom_call.1} parent=5 // pred_check_branch
        %232 = sbr.rel (%p230) target = $region40
      $region39: #{tpu_custom_call.1} parent=5 // pred_region
        // Predicated region
        $region41: #{tpu_custom_call.1} parent=39 // pred_check
          %p233 = pneg %p38
        $region42: #{tpu_custom_call.1} parent=39 // pred_check_branch
          %235 = sbr.rel (%p233) target = $region44
        $region43: #{tpu_custom_call.1} parent=39 // pred_region
          %s236 = smul.u32 2, %s18
          %p237 = scmp.lt.s32.totalorder %s236, 3
          %s238 = scalar_select %p237, %s236, 3
          %s239 = smul.addr %s238, 4
          %s240 = scalar_lea.vmem %s0, %s239
          %s241 = smul.u32 2, %s18
        $region44: #{tpu_custom_call.1} parent=39 // pred_fallthru
          _
      $region40: #{tpu_custom_call.1} parent=5 // pred_fallthru
        _
      %p242 = scmp.le.s32.totalorder 1, %s18
      %p243 = scmp.lt.s32.totalorder %s18, 3
      %p244 = pnand %p242, %p243
      %p245 = pneg %p244
      // Predicated region
      $region45: #{tpu_custom_call.1} parent=5 // pred_check
        _
      $region46: #{tpu_custom_call.1} parent=5 // pred_check_branch
        %247 = sbr.rel (%p244) target = $region48
      $region47: #{tpu_custom_call.1} parent=5 // pred_region
        %s248 = ssub.s32 %s18, 1
        %s249 = smul.u32 2, %s23
        %p250 = scmp.lt.s32.totalorder %s249, 3
        %s251 = scalar_select %p250, %s249, 3
        %s252 = smul.addr %s251, 4
        %s253 = scalar_lea.vmem %s0, %s252
        %p254 = pneg %p44
        %p255 = pneg %p41
        %p256 = pneg %p65
        %p257 = pneg %p62
        %p258 = pneg %p86
        %p259 = pneg %p83
        %p260 = pneg %p107
        %p261 = pneg %p104
        %p262 = pneg %p128
        %p263 = pneg %p125
        %p264 = pneg %p149
        %p265 = pneg %p146
        %p266 = pneg %p170
        %p267 = pneg %p167
        %p268 = pneg %p196
        %p269 = pneg %p193
        %s270 = sand.u32 %s183, 1
        %s271 = scalar_lea.sflag [#allocation4], %s270
        %s272 = sand.u32 %s183, 1
        %s273 = smul.addr %s272, 2
        %s274 = scalar_lea.vmem [#allocation3], %s273
        %s275 = smul.u32 2, %s23
        %p276 = scmp.lt.s32.totalorder %s275, 3
        %s277 = scalar_select %p276, %s275, 3
        %s278 = smul.addr %s277, 4
        %s279 = scalar_lea.vmem %s0, %s278
        %s280 = smul.u32 2, %s23
        %s281 = smul.u32 2, %s23
        %v283 = vld [vmem:[%s2] sm:$0xff]
        %v284 = vld [vmem:[%s2 + $0x8] sm:$0xff]
        %v285 = vld [vmem:[%s2 + $0x10] sm:$0xff]
        %v286 = vld [vmem:[%s2 + $0x18] sm:$0xff]
        %v287 = vld [vmem:[%s2 + $0x20] sm:$0xff]
        %v288 = vld [vmem:[%s2 + $0x28] sm:$0xff]
        %v289 = vld [vmem:[%s2 + $0x30] sm:$0xff]
        %v290 = vld [vmem:[%s2 + $0x38] sm:$0xff]
        %v291 = vld [vmem:[%s2 + $0x40] sm:$0xff]
        %v292 = vld [vmem:[%s2 + $0x48] sm:$0xff]
        %v293 = vld [vmem:[%s2 + $0x50] sm:$0xff]
        %v294 = vld [vmem:[%s2 + $0x58] sm:$0xff]
        %v295 = vld [vmem:[%s2 + $0x60] sm:$0xff]
        %v296 = vld [vmem:[%s2 + $0x68] sm:$0xff]
        %v297 = vld [vmem:[%s2 + $0x70] sm:$0xff]
        %v298 = vld [vmem:[%s2 + $0x78] sm:$0xff]
        %v299 = vld [vmem:[%s1] sm:$0xff]
        %v300 = vld [vmem:[%s1 + $0x8] sm:$0xff]
        %v301 = vld [vmem:[%s1 + $0x10] sm:$0xff]
        %v302 = vld [vmem:[%s1 + $0x18] sm:$0xff]
        %v303 = vld [vmem:[%s1 + $0x20] sm:$0xff]
        %v304 = vld [vmem:[%s1 + $0x28] sm:$0xff]
        %v305 = vld [vmem:[%s1 + $0x30] sm:$0xff]
        %v306 = vld [vmem:[%s1 + $0x38] sm:$0xff]
        %v307 = vld [vmem:[%s1 + $0x40] sm:$0xff]
        %v308 = vld [vmem:[%s1 + $0x48] sm:$0xff]
        %v309 = vld [vmem:[%s1 + $0x50] sm:$0xff]
        %v310 = vld [vmem:[%s1 + $0x58] sm:$0xff]
        %v311 = vld [vmem:[%s1 + $0x60] sm:$0xff]
        %v312 = vld [vmem:[%s1 + $0x68] sm:$0xff]
        %v313 = vld [vmem:[%s1 + $0x70] sm:$0xff]
        %v314 = vld [vmem:[%s1 + $0x78] sm:$0xff]
        %v315 = vld [vmem:[%s279] ss:$4 sm:$0x3]
        %317 = vset.pattern.permute.xlu0 0
        %318 = vperm.xlu0 %317, %v299
        %v319 = vpop.permute.xlu0 %318
        %322 = vset.pattern.permute.xlu0 0
        %323 = vperm.xlu0 %322, %v300
        %v324 = vpop.permute.xlu0 %323
        %327 = vset.pattern.permute.xlu0 0
        %328 = vperm.xlu0 %327, %v301
        %v329 = vpop.permute.xlu0 %328
        %332 = vset.pattern.permute.xlu0 0
        %333 = vperm.xlu0 %332, %v302
        %v334 = vpop.permute.xlu0 %333
        %337 = vset.pattern.permute.xlu0 0
        %338 = vperm.xlu0 %337, %v303
        %v339 = vpop.permute.xlu0 %338
        %342 = vset.pattern.permute.xlu0 0
        %343 = vperm.xlu0 %342, %v304
        %v344 = vpop.permute.xlu0 %343
        %347 = vset.pattern.permute.xlu0 0
        %348 = vperm.xlu0 %347, %v305
        %v349 = vpop.permute.xlu0 %348
        %352 = vset.pattern.permute.xlu0 0
        %353 = vperm.xlu0 %352, %v306
        %v354 = vpop.permute.xlu0 %353
        %357 = vset.pattern.permute.xlu0 0
        %358 = vperm.xlu0 %357, %v307
        %v359 = vpop.permute.xlu0 %358
        %362 = vset.pattern.permute.xlu0 0
        %363 = vperm.xlu0 %362, %v308
        %v364 = vpop.permute.xlu0 %363
        %367 = vset.pattern.permute.xlu0 0
        %368 = vperm.xlu0 %367, %v309
        %v369 = vpop.permute.xlu0 %368
        %372 = vset.pattern.permute.xlu0 0
        %373 = vperm.xlu0 %372, %v310
        %v374 = vpop.permute.xlu0 %373
        %377 = vset.pattern.permute.xlu0 0
        %378 = vperm.xlu0 %377, %v311
        %v379 = vpop.permute.xlu0 %378
        %382 = vset.pattern.permute.xlu0 0
        %383 = vperm.xlu0 %382, %v312
        %v384 = vpop.permute.xlu0 %383
        %387 = vset.pattern.permute.xlu0 0
        %388 = vperm.xlu0 %387, %v313
        %v389 = vpop.permute.xlu0 %388
        %392 = vset.pattern.permute.xlu0 0
        %393 = vperm.xlu0 %392, %v314
        %v394 = vpop.permute.xlu0 %393
        %v397 = vlaneseq
        %v398 = vshrl.u32 %v397, 7
        %v399 = vsub.s32 0, %v398
        %v400 = vrot.slane %v315, %v399
        %v401 = vlaneseq
        %v402 = vshrl.u32 %v401, 7
        %v403 = vsub.s32 1, %v402
        %v404 = vrot.slane %v315, %v403
        %v407 = vmul.f32 %v319, %v400
        %v408 = vmul.f32 %v319, %v404
        %v409 = vmul.f32 %v324, %v400
        %v410 = vmul.f32 %v324, %v404
        %v411 = vmul.f32 %v329, %v400
        %v412 = vmul.f32 %v329, %v404
        %v413 = vmul.f32 %v334, %v400
        %v414 = vmul.f32 %v334, %v404
        %v415 = vmul.f32 %v339, %v400
        %v416 = vmul.f32 %v339, %v404
        %v417 = vmul.f32 %v344, %v400
        %v418 = vmul.f32 %v344, %v404
        %v419 = vmul.f32 %v349, %v400
        %v420 = vmul.f32 %v349, %v404
        %v421 = vmul.f32 %v354, %v400
        %v422 = vmul.f32 %v354, %v404
        %v423 = vmul.f32 %v359, %v400
        %v424 = vmul.f32 %v359, %v404
        %v425 = vmul.f32 %v364, %v400
        %v426 = vmul.f32 %v364, %v404
        %v427 = vmul.f32 %v369, %v400
        %v428 = vmul.f32 %v369, %v404
        %v429 = vmul.f32 %v374, %v400
        %v430 = vmul.f32 %v374, %v404
        %v431 = vmul.f32 %v379, %v400
        %v432 = vmul.f32 %v379, %v404
        %v433 = vmul.f32 %v384, %v400
        %v434 = vmul.f32 %v384, %v404
        %v435 = vmul.f32 %v389, %v400
        %v436 = vmul.f32 %v389, %v404
        %v437 = vmul.f32 %v394, %v400
        %v438 = vmul.f32 %v394, %v404
        %440 = vset.pattern.permute.xlu0 0
        %441 = vperm.xlu0 %440, %v283
        %v442 = vpop.permute.xlu0 %441
        %445 = vset.pattern.permute.xlu0 0
        %446 = vperm.xlu0 %445, %v284
        %v447 = vpop.permute.xlu0 %446
        %450 = vset.pattern.permute.xlu0 0
        %451 = vperm.xlu0 %450, %v285
        %v452 = vpop.permute.xlu0 %451
        %455 = vset.pattern.permute.xlu0 0
        %456 = vperm.xlu0 %455, %v286
        %v457 = vpop.permute.xlu0 %456
        %460 = vset.pattern.permute.xlu0 0
        %461 = vperm.xlu0 %460, %v287
        %v462 = vpop.permute.xlu0 %461
        %465 = vset.pattern.permute.xlu0 0
        %466 = vperm.xlu0 %465, %v288
        %v467 = vpop.permute.xlu0 %466
        %470 = vset.pattern.permute.xlu0 0
        %471 = vperm.xlu0 %470, %v289
        %v472 = vpop.permute.xlu0 %471
        %475 = vset.pattern.permute.xlu0 0
        %476 = vperm.xlu0 %475, %v290
        %v477 = vpop.permute.xlu0 %476
        %480 = vset.pattern.permute.xlu0 0
        %481 = vperm.xlu0 %480, %v291
        %v482 = vpop.permute.xlu0 %481
        %485 = vset.pattern.permute.xlu0 0
        %486 = vperm.xlu0 %485, %v292
        %v487 = vpop.permute.xlu0 %486
        %490 = vset.pattern.permute.xlu0 0
        %491 = vperm.xlu0 %490, %v293
        %v492 = vpop.permute.xlu0 %491
        %495 = vset.pattern.permute.xlu0 0
        %496 = vperm.xlu0 %495, %v294
        %v497 = vpop.permute.xlu0 %496
        %500 = vset.pattern.permute.xlu0 0
        %501 = vperm.xlu0 %500, %v295
        %v502 = vpop.permute.xlu0 %501
        %505 = vset.pattern.permute.xlu0 0
        %506 = vperm.xlu0 %505, %v296
        %v507 = vpop.permute.xlu0 %506
        %510 = vset.pattern.permute.xlu0 0
        %511 = vperm.xlu0 %510, %v297
        %v512 = vpop.permute.xlu0 %511
        %515 = vset.pattern.permute.xlu0 0
        %516 = vperm.xlu0 %515, %v298
        %v517 = vpop.permute.xlu0 %516
        %v519 = vadd.f32 %v442, %v407
        %v520 = vadd.f32 %v442, %v408
        %v521 = vadd.f32 %v447, %v409
        %v522 = vadd.f32 %v447, %v410
        %v523 = vadd.f32 %v452, %v411
        %v524 = vadd.f32 %v452, %v412
        %v525 = vadd.f32 %v457, %v413
        %v526 = vadd.f32 %v457, %v414
        %v527 = vadd.f32 %v462, %v415
        %v528 = vadd.f32 %v462, %v416
        %v529 = vadd.f32 %v467, %v417
        %v530 = vadd.f32 %v467, %v418
        %v531 = vadd.f32 %v472, %v419
        %v532 = vadd.f32 %v472, %v420
        %v533 = vadd.f32 %v477, %v421
        %v534 = vadd.f32 %v477, %v422
        %v535 = vadd.f32 %v482, %v423
        %v536 = vadd.f32 %v482, %v424
        %v537 = vadd.f32 %v487, %v425
        %v538 = vadd.f32 %v487, %v426
        %v539 = vadd.f32 %v492, %v427
        %v540 = vadd.f32 %v492, %v428
        %v541 = vadd.f32 %v497, %v429
        %v542 = vadd.f32 %v497, %v430
        %v543 = vadd.f32 %v502, %v431
        %v544 = vadd.f32 %v502, %v432
        %v545 = vadd.f32 %v507, %v433
        %v546 = vadd.f32 %v507, %v434
        %v547 = vadd.f32 %v512, %v435
        %v548 = vadd.f32 %v512, %v436
        %v549 = vadd.f32 %v517, %v437
        %v550 = vadd.f32 %v517, %v438
        %s551 = scalar_lea.vmem %s279, 1
        %v552 = vld [vmem:[%s551] ss:$4 sm:$0x3]
        %553 = vset.pattern.permute.xlu0 1
        %554 = vperm.xlu0 %553, %v299
        %v555 = vpop.permute.xlu0 %554
        %557 = vset.pattern.permute.xlu0 1
        %558 = vperm.xlu0 %557, %v300
        %v559 = vpop.permute.xlu0 %558
        %561 = vset.pattern.permute.xlu0 1
        %562 = vperm.xlu0 %561, %v301
        %v563 = vpop.permute.xlu0 %562
        %565 = vset.pattern.permute.xlu0 1
        %566 = vperm.xlu0 %565, %v302
        %v567 = vpop.permute.xlu0 %566
        %569 = vset.pattern.permute.xlu0 1
        %570 = vperm.xlu0 %569, %v303
        %v571 = vpop.permute.xlu0 %570
        %573 = vset.pattern.permute.xlu0 1
        %574 = vperm.xlu0 %573, %v304
        %v575 = vpop.permute.xlu0 %574
        %577 = vset.pattern.permute.xlu0 1
        %578 = vperm.xlu0 %577, %v305
        %v579 = vpop.permute.xlu0 %578
        %581 = vset.pattern.permute.xlu0 1
        %582 = vperm.xlu0 %581, %v306
        %v583 = vpop.permute.xlu0 %582
        %585 = vset.pattern.permute.xlu0 1
        %586 = vperm.xlu0 %585, %v307
        %v587 = vpop.permute.xlu0 %586
        %589 = vset.pattern.permute.xlu0 1
        %590 = vperm.xlu0 %589, %v308
        %v591 = vpop.permute.xlu0 %590
        %593 = vset.pattern.permute.xlu0 1
        %594 = vperm.xlu0 %593, %v309
        %v595 = vpop.permute.xlu0 %594
        %597 = vset.pattern.permute.xlu0 1
        %598 = vperm.xlu0 %597, %v310
        %v599 = vpop.permute.xlu0 %598
        %601 = vset.pattern.permute.xlu0 1
        %602 = vperm.xlu0 %601, %v311
        %v603 = vpop.permute.xlu0 %602
        %605 = vset.pattern.permute.xlu0 1
        %606 = vperm.xlu0 %605, %v312
        %v607 = vpop.permute.xlu0 %606
        %609 = vset.pattern.permute.xlu0 1
        %610 = vperm.xlu0 %609, %v313
        %v611 = vpop.permute.xlu0 %610
        %613 = vset.pattern.permute.xlu0 1
        %614 = vperm.xlu0 %613, %v314
        %v615 = vpop.permute.xlu0 %614
        %v618 = vlaneseq
        %v619 = vshrl.u32 %v618, 7
        %v620 = vsub.s32 0, %v619
        %v621 = vrot.slane %v552, %v620
        %v622 = vlaneseq
        %v623 = vshrl.u32 %v622, 7
        %v624 = vsub.s32 1, %v623
        %v625 = vrot.slane %v552, %v624
        %v628 = vmul.f32 %v555, %v621
        %v629 = vmul.f32 %v555, %v625
        %v630 = vmul.f32 %v559, %v621
        %v631 = vmul.f32 %v559, %v625
        %v632 = vmul.f32 %v563, %v621
        %v633 = vmul.f32 %v563, %v625
        %v634 = vmul.f32 %v567, %v621
        %v635 = vmul.f32 %v567, %v625
        %v636 = vmul.f32 %v571, %v621
        %v637 = vmul.f32 %v571, %v625
        %v638 = vmul.f32 %v575, %v621
        %v639 = vmul.f32 %v575, %v625
        %v640 = vmul.f32 %v579, %v621
        %v641 = vmul.f32 %v579, %v625
        %v642 = vmul.f32 %v583, %v621
        %v643 = vmul.f32 %v583, %v625
        %v644 = vmul.f32 %v587, %v621
        %v645 = vmul.f32 %v587, %v625
        %v646 = vmul.f32 %v591, %v621
        %v647 = vmul.f32 %v591, %v625
        %v648 = vmul.f32 %v595, %v621
        %v649 = vmul.f32 %v595, %v625
        %v650 = vmul.f32 %v599, %v621
        %v651 = vmul.f32 %v599, %v625
        %v652 = vmul.f32 %v603, %v621
        %v653 = vmul.f32 %v603, %v625
        %v654 = vmul.f32 %v607, %v621
        %v655 = vmul.f32 %v607, %v625
        %v656 = vmul.f32 %v611, %v621
        %v657 = vmul.f32 %v611, %v625
        %v658 = vmul.f32 %v615, %v621
        %v659 = vmul.f32 %v615, %v625
        %v660 = vadd.f32 %v519, %v628
        %v661 = vadd.f32 %v520, %v629
        %v662 = vadd.f32 %v521, %v630
        %v663 = vadd.f32 %v522, %v631
        %v664 = vadd.f32 %v523, %v632
        %v665 = vadd.f32 %v524, %v633
        %v666 = vadd.f32 %v525, %v634
        %v667 = vadd.f32 %v526, %v635
        %v668 = vadd.f32 %v527, %v636
        %v669 = vadd.f32 %v528, %v637
        %v670 = vadd.f32 %v529, %v638
        %v671 = vadd.f32 %v530, %v639
        %v672 = vadd.f32 %v531, %v640
        %v673 = vadd.f32 %v532, %v641
        %v674 = vadd.f32 %v533, %v642
        %v675 = vadd.f32 %v534, %v643
        %v676 = vadd.f32 %v535, %v644
        %v677 = vadd.f32 %v536, %v645
        %v678 = vadd.f32 %v537, %v646
        %v679 = vadd.f32 %v538, %v647
        %v680 = vadd.f32 %v539, %v648
        %v681 = vadd.f32 %v540, %v649
        %v682 = vadd.f32 %v541, %v650
        %v683 = vadd.f32 %v542, %v651
        %v684 = vadd.f32 %v543, %v652
        %v685 = vadd.f32 %v544, %v653
        %v686 = vadd.f32 %v545, %v654
        %v687 = vadd.f32 %v546, %v655
        %v688 = vadd.f32 %v547, %v656
        %v689 = vadd.f32 %v548, %v657
        %v690 = vadd.f32 %v549, %v658
        %v691 = vadd.f32 %v550, %v659
        %s692 = scalar_lea.vmem %s279, 2
        %v693 = vld [vmem:[%s692] ss:$4 sm:$0x3]
        %694 = vset.pattern.permute.xlu0 2
        %695 = vperm.xlu0 %694, %v299
        %v696 = vpop.permute.xlu0 %695
        %698 = vset.pattern.permute.xlu0 2
        %699 = vperm.xlu0 %698, %v300
        %v700 = vpop.permute.xlu0 %699
        %702 = vset.pattern.permute.xlu0 2
        %703 = vperm.xlu0 %702, %v301
        %v704 = vpop.permute.xlu0 %703
        %706 = vset.pattern.permute.xlu0 2
        %707 = vperm.xlu0 %706, %v302
        %v708 = vpop.permute.xlu0 %707
        %710 = vset.pattern.permute.xlu0 2
        %711 = vperm.xlu0 %710, %v303
        %v712 = vpop.permute.xlu0 %711
        %714 = vset.pattern.permute.xlu0 2
        %715 = vperm.xlu0 %714, %v304
        %v716 = vpop.permute.xlu0 %715
        %718 = vset.pattern.permute.xlu0 2
        %719 = vperm.xlu0 %718, %v305
        %v720 = vpop.permute.xlu0 %719
        %722 = vset.pattern.permute.xlu0 2
        %723 = vperm.xlu0 %722, %v306
        %v724 = vpop.permute.xlu0 %723
        %726 = vset.pattern.permute.xlu0 2
        %727 = vperm.xlu0 %726, %v307
        %v728 = vpop.permute.xlu0 %727
        %730 = vset.pattern.permute.xlu0 2
        %731 = vperm.xlu0 %730, %v308
        %v732 = vpop.permute.xlu0 %731
        %734 = vset.pattern.permute.xlu0 2
        %735 = vperm.xlu0 %734, %v309
        %v736 = vpop.permute.xlu0 %735
        %738 = vset.pattern.permute.xlu0 2
        %739 = vperm.xlu0 %738, %v310
        %v740 = vpop.permute.xlu0 %739
        %742 = vset.pattern.permute.xlu0 2
        %743 = vperm.xlu0 %742, %v311
        %v744 = vpop.permute.xlu0 %743
        %746 = vset.pattern.permute.xlu0 2
        %747 = vperm.xlu0 %746, %v312
        %v748 = vpop.permute.xlu0 %747
        %750 = vset.pattern.permute.xlu0 2
        %751 = vperm.xlu0 %750, %v313
        %v752 = vpop.permute.xlu0 %751
        %754 = vset.pattern.permute.xlu0 2
        %755 = vperm.xlu0 %754, %v314
        %v756 = vpop.permute.xlu0 %755
        %v759 = vlaneseq
        %v760 = vshrl.u32 %v759, 7
        %v761 = vsub.s32 0, %v760
        %v762 = vrot.slane %v693, %v761
        %v763 = vlaneseq
        %v764 = vshrl.u32 %v763, 7
        %v765 = vsub.s32 1, %v764
        %v766 = vrot.slane %v693, %v765
        %v769 = vmul.f32 %v696, %v762
        %v770 = vmul.f32 %v696, %v766
        %v771 = vmul.f32 %v700, %v762
        %v772 = vmul.f32 %v700, %v766
        %v773 = vmul.f32 %v704, %v762
        %v774 = vmul.f32 %v704, %v766
        %v775 = vmul.f32 %v708, %v762
        %v776 = vmul.f32 %v708, %v766
        %v777 = vmul.f32 %v712, %v762
        %v778 = vmul.f32 %v712, %v766
        %v779 = vmul.f32 %v716, %v762
        %v780 = vmul.f32 %v716, %v766
        %v781 = vmul.f32 %v720, %v762
        %v782 = vmul.f32 %v720, %v766
        %v783 = vmul.f32 %v724, %v762
        %v784 = vmul.f32 %v724, %v766
        %v785 = vmul.f32 %v728, %v762
        %v786 = vmul.f32 %v728, %v766
        %v787 = vmul.f32 %v732, %v762
        %v788 = vmul.f32 %v732, %v766
        %v789 = vmul.f32 %v736, %v762
        %v790 = vmul.f32 %v736, %v766
        %v791 = vmul.f32 %v740, %v762
        %v792 = vmul.f32 %v740, %v766
        %v793 = vmul.f32 %v744, %v762
        %v794 = vmul.f32 %v744, %v766
        %v795 = vmul.f32 %v748, %v762
        %v796 = vmul.f32 %v748, %v766
        %v797 = vmul.f32 %v752, %v762
        %v798 = vmul.f32 %v752, %v766
        %v799 = vmul.f32 %v756, %v762
        %v800 = vmul.f32 %v756, %v766
        %v801 = vadd.f32 %v660, %v769
        %v802 = vadd.f32 %v661, %v770
        %v803 = vadd.f32 %v662, %v771
        %v804 = vadd.f32 %v663, %v772
        %v805 = vadd.f32 %v664, %v773
        %v806 = vadd.f32 %v665, %v774
        %v807 = vadd.f32 %v666, %v775
        %v808 = vadd.f32 %v667, %v776
        %v809 = vadd.f32 %v668, %v777
        %v810 = vadd.f32 %v669, %v778
        %v811 = vadd.f32 %v670, %v779
        %v812 = vadd.f32 %v671, %v780
        %v813 = vadd.f32 %v672, %v781
        %v814 = vadd.f32 %v673, %v782
        %v815 = vadd.f32 %v674, %v783
        %v816 = vadd.f32 %v675, %v784
        %v817 = vadd.f32 %v676, %v785
        %v818 = vadd.f32 %v677, %v786
        %v819 = vadd.f32 %v678, %v787
        %v820 = vadd.f32 %v679, %v788
        %v821 = vadd.f32 %v680, %v789
        %v822 = vadd.f32 %v681, %v790
        %v823 = vadd.f32 %v682, %v791
        %v824 = vadd.f32 %v683, %v792
        %v825 = vadd.f32 %v684, %v793
        %v826 = vadd.f32 %v685, %v794
        %v827 = vadd.f32 %v686, %v795
        %v828 = vadd.f32 %v687, %v796
        %v829 = vadd.f32 %v688, %v797
        %v830 = vadd.f32 %v689, %v798
        %v831 = vadd.f32 %v690, %v799
        %v832 = vadd.f32 %v691, %v800
        %v833 = vmax.f32 %v801, 0.0
        %v834 = vmax.f32 %v802, 0.0
        %v835 = vmax.f32 %v803, 0.0
        %v836 = vmax.f32 %v804, 0.0
        %v837 = vmax.f32 %v805, 0.0
        %v838 = vmax.f32 %v806, 0.0
        %v839 = vmax.f32 %v807, 0.0
        %v840 = vmax.f32 %v808, 0.0
        %v841 = vmax.f32 %v809, 0.0
        %v842 = vmax.f32 %v810, 0.0
        %v843 = vmax.f32 %v811, 0.0
        %v844 = vmax.f32 %v812, 0.0
        %v845 = vmax.f32 %v813, 0.0
        %v846 = vmax.f32 %v814, 0.0
        %v847 = vmax.f32 %v815, 0.0
        %v848 = vmax.f32 %v816, 0.0
        %v849 = vmax.f32 %v817, 0.0
        %v850 = vmax.f32 %v818, 0.0
        %v851 = vmax.f32 %v819, 0.0
        %v852 = vmax.f32 %v820, 0.0
        %v853 = vmax.f32 %v821, 0.0
        %v854 = vmax.f32 %v822, 0.0
        %v855 = vmax.f32 %v823, 0.0
        %v856 = vmax.f32 %v824, 0.0
        %v857 = vmax.f32 %v825, 0.0
        %v858 = vmax.f32 %v826, 0.0
        %v859 = vmax.f32 %v827, 0.0
        %v860 = vmax.f32 %v828, 0.0
        %v861 = vmax.f32 %v829, 0.0
        %v862 = vmax.f32 %v830, 0.0
        %v863 = vmax.f32 %v831, 0.0
        %v864 = vmax.f32 %v832, 0.0
        %v865 = vpack.c.bf16 %v835, %v833
        %v866 = vpack.c.bf16 %v836, %v834
        %v867 = vpack.c.bf16 %v839, %v837
        %v868 = vpack.c.bf16 %v840, %v838
        %v869 = vpack.c.bf16 %v843, %v841
        %v870 = vpack.c.bf16 %v844, %v842
        %v871 = vpack.c.bf16 %v847, %v845
        %v872 = vpack.c.bf16 %v848, %v846
        %v873 = vpack.c.bf16 %v851, %v849
        %v874 = vpack.c.bf16 %v852, %v850
        %v875 = vpack.c.bf16 %v855, %v853
        %v876 = vpack.c.bf16 %v856, %v854
        %v877 = vpack.c.bf16 %v859, %v857
        %v878 = vpack.c.bf16 %v860, %v858
        %v879 = vpack.c.bf16 %v863, %v861
        %v880 = vpack.c.bf16 %v864, %v862
        %v881 = vld [vmem:[%s3] sm:$0xf]
        %v882 = vld [vmem:[%s3 + $0x4] sm:$0xf]
        %v883 = vld [vmem:[%s3 + $0x8] sm:$0xf]
        %v884 = vld [vmem:[%s3 + $0xc] sm:$0xf]
        %v885 = vld [vmem:[%s3 + $0x10] sm:$0xf]
        %v886 = vld [vmem:[%s3 + $0x14] sm:$0xf]
        %v887 = vld [vmem:[%s3 + $0x18] sm:$0xf]
        %v888 = vld [vmem:[%s3 + $0x1c] sm:$0xf]
        %v889 = vld [vmem:[%s3 + $0x20] sm:$0xf]
        %v890 = vld [vmem:[%s3 + $0x24] sm:$0xf]
        %v891 = vld [vmem:[%s3 + $0x28] sm:$0xf]
        %v892 = vld [vmem:[%s3 + $0x2c] sm:$0xf]
        %v893 = vld [vmem:[%s3 + $0x30] sm:$0xf]
        %v894 = vld [vmem:[%s3 + $0x34] sm:$0xf]
        %v895 = vld [vmem:[%s3 + $0x38] sm:$0xf]
        %v896 = vld [vmem:[%s3 + $0x3c] sm:$0xf]
        %v897 = vld [vmem:[%s4] sm:$0xff]
        %v898 = vld [vmem:[%s4 + $0x8] sm:$0xff]
        %v899 = vld [vmem:[%s4 + $0x10] sm:$0xff]
        %v900 = vld [vmem:[%s4 + $0x18] sm:$0xff]
        %v901 = vld [vmem:[%s4 + $0x20] sm:$0xff]
        %v902 = vld [vmem:[%s4 + $0x28] sm:$0xff]
        %v903 = vld [vmem:[%s4 + $0x30] sm:$0xff]
        %v904 = vld [vmem:[%s4 + $0x38] sm:$0xff]
        %v905 = vld [vmem:[%s4 + $0x40] sm:$0xff]
        %v906 = vld [vmem:[%s4 + $0x48] sm:$0xff]
        %v907 = vld [vmem:[%s4 + $0x50] sm:$0xff]
        %v908 = vld [vmem:[%s4 + $0x58] sm:$0xff]
        %v909 = vld [vmem:[%s4 + $0x60] sm:$0xff]
        %v910 = vld [vmem:[%s4 + $0x68] sm:$0xff]
        %v911 = vld [vmem:[%s4 + $0x70] sm:$0xff]
        %v912 = vld [vmem:[%s4 + $0x78] sm:$0xff]
        %914 = vset.pattern.permute.xlu0 0
        %915 = vperm.xlu0 %914, %v897
        %v916 = vpop.permute.xlu0 %915
        %919 = vset.pattern.permute.xlu0 0
        %920 = vperm.xlu0 %919, %v898
        %v921 = vpop.permute.xlu0 %920
        %924 = vset.pattern.permute.xlu0 0
        %925 = vperm.xlu0 %924, %v899
        %v926 = vpop.permute.xlu0 %925
        %929 = vset.pattern.permute.xlu0 0
        %930 = vperm.xlu0 %929, %v900
        %v931 = vpop.permute.xlu0 %930
        %934 = vset.pattern.permute.xlu0 0
        %935 = vperm.xlu0 %934, %v901
        %v936 = vpop.permute.xlu0 %935
        %939 = vset.pattern.permute.xlu0 0
        %940 = vperm.xlu0 %939, %v902
        %v941 = vpop.permute.xlu0 %940
        %944 = vset.pattern.permute.xlu0 0
        %945 = vperm.xlu0 %944, %v903
        %v946 = vpop.permute.xlu0 %945
        %949 = vset.pattern.permute.xlu0 0
        %950 = vperm.xlu0 %949, %v904
        %v951 = vpop.permute.xlu0 %950
        %954 = vset.pattern.permute.xlu0 0
        %955 = vperm.xlu0 %954, %v905
        %v956 = vpop.permute.xlu0 %955
        %959 = vset.pattern.permute.xlu0 0
        %960 = vperm.xlu0 %959, %v906
        %v961 = vpop.permute.xlu0 %960
        %964 = vset.pattern.permute.xlu0 0
        %965 = vperm.xlu0 %964, %v907
        %v966 = vpop.permute.xlu0 %965
        %969 = vset.pattern.permute.xlu0 0
        %970 = vperm.xlu0 %969, %v908
        %v971 = vpop.permute.xlu0 %970
        %974 = vset.pattern.permute.xlu0 0
        %975 = vperm.xlu0 %974, %v909
        %v976 = vpop.permute.xlu0 %975
        %979 = vset.pattern.permute.xlu0 0
        %980 = vperm.xlu0 %979, %v910
        %v981 = vpop.permute.xlu0 %980
        %984 = vset.pattern.permute.xlu0 0
        %985 = vperm.xlu0 %984, %v911
        %v986 = vpop.permute.xlu0 %985
        %989 = vset.pattern.permute.xlu0 0
        %990 = vperm.xlu0 %989, %v912
        %v991 = vpop.permute.xlu0 %990
        %v1009 = vunpack.c.l.b16 %v881
        %v1010 = vunpack.c.l.b16 %v882
        %v1011 = vunpack.c.l.b16 %v883
        %v1012 = vunpack.c.l.b16 %v884
        %v1013 = vunpack.c.l.b16 %v885
        %v1014 = vunpack.c.l.b16 %v886
        %v1015 = vunpack.c.l.b16 %v887
        %v1016 = vunpack.c.l.b16 %v888
        %v1017 = vunpack.c.l.b16 %v889
        %v1018 = vunpack.c.l.b16 %v890
        %v1019 = vunpack.c.l.b16 %v891
        %v1020 = vunpack.c.l.b16 %v892
        %v1021 = vunpack.c.l.b16 %v893
        %v1022 = vunpack.c.l.b16 %v894
        %v1023 = vunpack.c.l.b16 %v895
        %v1024 = vunpack.c.l.b16 %v896
        %v1025 = vpack.c.b16 %v1010, %v1009
        %v1026 = vpack.c.b16 %v1012, %v1011
        %v1027 = vpack.c.b16 %v1014, %v1013
        %v1028 = vpack.c.b16 %v1016, %v1015
        %v1029 = vpack.c.b16 %v1018, %v1017
        %v1030 = vpack.c.b16 %v1020, %v1019
        %v1031 = vpack.c.b16 %v1022, %v1021
        %v1032 = vpack.c.b16 %v1024, %v1023
        %1041 = vmatprep.subr.bf16.mxu0 %v880
        %1042 = vmatpush1.bf16.msra.mxu0 %v879
        %1043 = vmatprep.subr.bf16.mxu0 %v878
        %1044 = vmatpush1.bf16.msra.mxu0 %v877
        %1045 = vmatprep.subr.bf16.mxu0 %v876
        %1046 = vmatpush1.bf16.msra.mxu0 %v875
        %1047 = vmatprep.subr.bf16.mxu0 %v874
        %1048 = vmatpush1.bf16.msra.mxu0 %v873
        %1049 = vmatprep.subr.bf16.mxu0 %v872
        %1050 = vmatpush1.bf16.msra.mxu0 %v871
        %1051 = vmatprep.subr.bf16.mxu0 %v870
        %1052 = vmatpush1.bf16.msra.mxu0 %v869
        %1053 = vmatprep.subr.bf16.mxu0 %v868
        %1054 = vmatpush1.bf16.msra.mxu0 %v867
        %1055 = vmatprep.subr.bf16.mxu0 %v866
        %1056 = vmatpush1.bf16.msra.mxu0 %v865
        %1057 = vmatprep.subr.bf16.mxu0 0
        %1058 = vmatpush2.bf16.msra.mxu0 0
        %1059 = vmatprep.subr.bf16.mxu0 0
        %1060 = vmatpush2.bf16.msra.mxu0 0
        %1061 = vmatprep.subr.bf16.mxu0 0
        %1062 = vmatpush2.bf16.msra.mxu0 0
        %1063 = vmatprep.subr.bf16.mxu0 0
        %1064 = vmatpush2.bf16.msra.mxu0 0
        %1065 = vmatprep.subr.bf16.mxu0 0
        %1066 = vmatpush2.bf16.msra.mxu0 0
        %1067 = vmatprep.subr.bf16.mxu0 0
        %1068 = vmatpush2.bf16.msra.mxu0 0
        %1069 = vmatprep.subr.bf16.mxu0 0
        %1070 = vmatpush2.bf16.msra.mxu0 0
        %1071 = vmatprep.subr.bf16.mxu0 0
        %1072 = vmatpush2.bf16.msra.mxu0 0
        %1073 = vmatprep.mubr.bf16.mxu0 0
        %1074 = vmatmul.mubr.bf16.gmra.mxu0 %v1025
        %v1075 = vpop.f32.mrf.mxu0
        %v1076 = vadd.f32 %v916, %v1075
        %v1077 = vpop.f32.mrf.mxu0
        %v1078 = vadd.f32 %v916, %v1077
        %v1079 = vpop.f32.mrf.mxu0
        %v1080 = vadd.f32 %v921, %v1079
        %v1081 = vpop.f32.mrf.mxu0
        %v1082 = vadd.f32 %v921, %v1081
        %1083 = vmatprep.mubr.bf16.mxu0 0
        %1084 = vmatmul.mubr.bf16.gmra.mxu0 %v1026
        %v1085 = vpop.f32.mrf.mxu0
        %v1086 = vadd.f32 %v926, %v1085
        %v1087 = vpop.f32.mrf.mxu0
        %v1088 = vadd.f32 %v926, %v1087
        %v1089 = vpop.f32.mrf.mxu0
        %v1090 = vadd.f32 %v931, %v1089
        %v1091 = vpop.f32.mrf.mxu0
        %v1092 = vadd.f32 %v931, %v1091
        %1093 = vmatprep.mubr.bf16.mxu0 0
        %1094 = vmatmul.mubr.bf16.gmra.mxu0 %v1027
        %v1095 = vpop.f32.mrf.mxu0
        %v1096 = vadd.f32 %v936, %v1095
        %v1097 = vpop.f32.mrf.mxu0
        %v1098 = vadd.f32 %v936, %v1097
        %v1099 = vpop.f32.mrf.mxu0
        %v1100 = vadd.f32 %v941, %v1099
        %v1101 = vpop.f32.mrf.mxu0
        %v1102 = vadd.f32 %v941, %v1101
        %1103 = vmatprep.mubr.bf16.mxu0 0
        %1104 = vmatmul.mubr.bf16.gmra.mxu0 %v1028
        %v1105 = vpop.f32.mrf.mxu0
        %v1106 = vadd.f32 %v946, %v1105
        %v1107 = vpop.f32.mrf.mxu0
        %v1108 = vadd.f32 %v946, %v1107
        %v1109 = vpop.f32.mrf.mxu0
        %v1110 = vadd.f32 %v951, %v1109
        %v1111 = vpop.f32.mrf.mxu0
        %v1112 = vadd.f32 %v951, %v1111
        %1113 = vmatprep.mubr.bf16.mxu0 0
        %1114 = vmatmul.mubr.bf16.gmra.mxu0 %v1029
        %v1115 = vpop.f32.mrf.mxu0
        %v1116 = vadd.f32 %v956, %v1115
        %v1117 = vpop.f32.mrf.mxu0
        %v1118 = vadd.f32 %v956, %v1117
        %v1119 = vpop.f32.mrf.mxu0
        %v1120 = vadd.f32 %v961, %v1119
        %v1121 = vpop.f32.mrf.mxu0
        %v1122 = vadd.f32 %v961, %v1121
        %1123 = vmatprep.mubr.bf16.mxu0 0
        %1124 = vmatmul.mubr.bf16.gmra.mxu0 %v1030
        %v1125 = vpop.f32.mrf.mxu0
        %v1126 = vadd.f32 %v966, %v1125
        %v1127 = vpop.f32.mrf.mxu0
        %v1128 = vadd.f32 %v966, %v1127
        %v1129 = vpop.f32.mrf.mxu0
        %v1130 = vadd.f32 %v971, %v1129
        %v1131 = vpop.f32.mrf.mxu0
        %v1132 = vadd.f32 %v971, %v1131
        %1133 = vmatprep.mubr.bf16.mxu0 0
        %1134 = vmatmul.mubr.bf16.gmra.mxu0 %v1031
        %v1135 = vpop.f32.mrf.mxu0
        %v1136 = vadd.f32 %v976, %v1135
        %v1137 = vpop.f32.mrf.mxu0
        %v1138 = vadd.f32 %v976, %v1137
        %v1139 = vpop.f32.mrf.mxu0
        %v1140 = vadd.f32 %v981, %v1139
        %v1141 = vpop.f32.mrf.mxu0
        %v1142 = vadd.f32 %v981, %v1141
        %1143 = vmatprep.mubr.bf16.mxu0 0
        %1144 = vmatmul.mubr.bf16.gmra.mxu0 %v1032
        %v1145 = vpop.f32.mrf.mxu0
        %v1146 = vadd.f32 %v986, %v1145
        %v1147 = vpop.f32.mrf.mxu0
        %v1148 = vadd.f32 %v986, %v1147
        %v1149 = vpop.f32.mrf.mxu0
        %v1150 = vadd.f32 %v991, %v1149
        %v1151 = vpop.f32.mrf.mxu0
        %v1152 = vadd.f32 %v991, %v1151
        %1153 = vdwg.mxu0
        %v1154 = vmax.f32 %v1076, 0.0
        %v1155 = vmax.f32 %v1078, 0.0
        %v1156 = vmax.f32 %v1080, 0.0
        %v1157 = vmax.f32 %v1082, 0.0
        %v1158 = vmax.f32 %v1086, 0.0
        %v1159 = vmax.f32 %v1088, 0.0
        %v1160 = vmax.f32 %v1090, 0.0
        %v1161 = vmax.f32 %v1092, 0.0
        %v1162 = vmax.f32 %v1096, 0.0
        %v1163 = vmax.f32 %v1098, 0.0
        %v1164 = vmax.f32 %v1100, 0.0
        %v1165 = vmax.f32 %v1102, 0.0
        %v1166 = vmax.f32 %v1106, 0.0
        %v1167 = vmax.f32 %v1108, 0.0
        %v1168 = vmax.f32 %v1110, 0.0
        %v1169 = vmax.f32 %v1112, 0.0
        %v1170 = vmax.f32 %v1116, 0.0
        %v1171 = vmax.f32 %v1118, 0.0
        %v1172 = vmax.f32 %v1120, 0.0
        %v1173 = vmax.f32 %v1122, 0.0
        %v1174 = vmax.f32 %v1126, 0.0
        %v1175 = vmax.f32 %v1128, 0.0
        %v1176 = vmax.f32 %v1130, 0.0
        %v1177 = vmax.f32 %v1132, 0.0
        %v1178 = vmax.f32 %v1136, 0.0
        %v1179 = vmax.f32 %v1138, 0.0
        %v1180 = vmax.f32 %v1140, 0.0
        %v1181 = vmax.f32 %v1142, 0.0
        %v1182 = vmax.f32 %v1146, 0.0
        %v1183 = vmax.f32 %v1148, 0.0
        %v1184 = vmax.f32 %v1150, 0.0
        %v1185 = vmax.f32 %v1152, 0.0
        %v1186 = vld [vmem:[%s5] sm:$0xff]
        %v1187 = vld [vmem:[%s5 + $0x8] sm:$0xff]
        %v1188 = vld [vmem:[%s5 + $0x10] sm:$0xff]
        %v1189 = vld [vmem:[%s5 + $0x18] sm:$0xff]
        %v1190 = vld [vmem:[%s5 + $0x20] sm:$0xff]
        %v1191 = vld [vmem:[%s5 + $0x28] sm:$0xff]
        %v1192 = vld [vmem:[%s5 + $0x30] sm:$0xff]
        %v1193 = vld [vmem:[%s5 + $0x38] sm:$0xff]
        %v1194 = vld [vmem:[%s5 + $0x40] sm:$0xff]
        %v1195 = vld [vmem:[%s5 + $0x48] sm:$0xff]
        %v1196 = vld [vmem:[%s5 + $0x50] sm:$0xff]
        %v1197 = vld [vmem:[%s5 + $0x58] sm:$0xff]
        %v1198 = vld [vmem:[%s5 + $0x60] sm:$0xff]
        %v1199 = vld [vmem:[%s5 + $0x68] sm:$0xff]
        %v1200 = vld [vmem:[%s5 + $0x70] sm:$0xff]
        %v1201 = vld [vmem:[%s5 + $0x78] sm:$0xff]
        %1203 = vset.pattern.permute.xlu0 0
        %1204 = vperm.xlu0 %1203, %v1186
        %v1205 = vpop.permute.xlu0 %1204
        %1208 = vset.pattern.permute.xlu0 0
        %1209 = vperm.xlu0 %1208, %v1187
        %v1210 = vpop.permute.xlu0 %1209
        %1213 = vset.pattern.permute.xlu0 0
        %1214 = vperm.xlu0 %1213, %v1188
        %v1215 = vpop.permute.xlu0 %1214
        %1218 = vset.pattern.permute.xlu0 0
        %1219 = vperm.xlu0 %1218, %v1189
        %v1220 = vpop.permute.xlu0 %1219
        %1223 = vset.pattern.permute.xlu0 0
        %1224 = vperm.xlu0 %1223, %v1190
        %v1225 = vpop.permute.xlu0 %1224
        %1228 = vset.pattern.permute.xlu0 0
        %1229 = vperm.xlu0 %1228, %v1191
        %v1230 = vpop.permute.xlu0 %1229
        %1233 = vset.pattern.permute.xlu0 0
        %1234 = vperm.xlu0 %1233, %v1192
        %v1235 = vpop.permute.xlu0 %1234
        %1238 = vset.pattern.permute.xlu0 0
        %1239 = vperm.xlu0 %1238, %v1193
        %v1240 = vpop.permute.xlu0 %1239
        %1243 = vset.pattern.permute.xlu0 0
        %1244 = vperm.xlu0 %1243, %v1194
        %v1245 = vpop.permute.xlu0 %1244
        %1248 = vset.pattern.permute.xlu0 0
        %1249 = vperm.xlu0 %1248, %v1195
        %v1250 = vpop.permute.xlu0 %1249
        %1253 = vset.pattern.permute.xlu0 0
        %1254 = vperm.xlu0 %1253, %v1196
        %v1255 = vpop.permute.xlu0 %1254
        %1258 = vset.pattern.permute.xlu0 0
        %1259 = vperm.xlu0 %1258, %v1197
        %v1260 = vpop.permute.xlu0 %1259
        %1263 = vset.pattern.permute.xlu0 0
        %1264 = vperm.xlu0 %1263, %v1198
        %v1265 = vpop.permute.xlu0 %1264
        %1268 = vset.pattern.permute.xlu0 0
        %1269 = vperm.xlu0 %1268, %v1199
        %v1270 = vpop.permute.xlu0 %1269
        %1273 = vset.pattern.permute.xlu0 0
        %1274 = vperm.xlu0 %1273, %v1200
        %v1275 = vpop.permute.xlu0 %1274
        %1278 = vset.pattern.permute.xlu0 0
        %1279 = vperm.xlu0 %1278, %v1201
        %v1280 = vpop.permute.xlu0 %1279
        %v1282 = vmul.f32 %v1205, %v1154
        %v1283 = vmul.f32 %v1205, %v1155
        %v1284 = vmul.f32 %v1210, %v1156
        %v1285 = vmul.f32 %v1210, %v1157
        %v1286 = vmul.f32 %v1215, %v1158
        %v1287 = vmul.f32 %v1215, %v1159
        %v1288 = vmul.f32 %v1220, %v1160
        %v1289 = vmul.f32 %v1220, %v1161
        %v1290 = vmul.f32 %v1225, %v1162
        %v1291 = vmul.f32 %v1225, %v1163
        %v1292 = vmul.f32 %v1230, %v1164
        %v1293 = vmul.f32 %v1230, %v1165
        %v1294 = vmul.f32 %v1235, %v1166
        %v1295 = vmul.f32 %v1235, %v1167
        %v1296 = vmul.f32 %v1240, %v1168
        %v1297 = vmul.f32 %v1240, %v1169
        %v1298 = vmul.f32 %v1245, %v1170
        %v1299 = vmul.f32 %v1245, %v1171
        %v1300 = vmul.f32 %v1250, %v1172
        %v1301 = vmul.f32 %v1250, %v1173
        %v1302 = vmul.f32 %v1255, %v1174
        %v1303 = vmul.f32 %v1255, %v1175
        %v1304 = vmul.f32 %v1260, %v1176
        %v1305 = vmul.f32 %v1260, %v1177
        %v1306 = vmul.f32 %v1265, %v1178
        %v1307 = vmul.f32 %v1265, %v1179
        %v1308 = vmul.f32 %v1270, %v1180
        %v1309 = vmul.f32 %v1270, %v1181
        %v1310 = vmul.f32 %v1275, %v1182
        %v1311 = vmul.f32 %v1275, %v1183
        %v1312 = vmul.f32 %v1280, %v1184
        %v1313 = vmul.f32 %v1280, %v1185
        %v1314 = vadd.f32 %v1282, %v1284
        %v1315 = vadd.f32 %v1314, %v1286
        %v1316 = vadd.f32 %v1315, %v1288
        %v1317 = vadd.f32 %v1316, %v1290
        %v1318 = vadd.f32 %v1317, %v1292
        %v1319 = vadd.f32 %v1318, %v1294
        %v1320 = vadd.f32 %v1319, %v1296
        %v1321 = vadd.f32 %v1320, %v1298
        %v1322 = vadd.f32 %v1321, %v1300
        %v1323 = vadd.f32 %v1322, %v1302
        %v1324 = vadd.f32 %v1323, %v1304
        %v1325 = vadd.f32 %v1324, %v1306
        %v1326 = vadd.f32 %v1325, %v1308
        %v1327 = vadd.f32 %v1326, %v1310
        %v1328 = vadd.f32 %v1327, %v1312
        %v1329 = vrot.slane %v1328, 4
        %v1330 = vadd.f32 %v1328, %v1329
        %v1331 = vrot.slane %v1330, 2
        %v1332 = vadd.f32 %v1330, %v1331
        %v1333 = vrot.slane %v1332, 1
        %v1334 = vadd.f32 %v1332, %v1333
        %v1335 = vadd.f32 %v1283, %v1285
        %v1336 = vadd.f32 %v1335, %v1287
        %v1337 = vadd.f32 %v1336, %v1289
        %v1338 = vadd.f32 %v1337, %v1291
        %v1339 = vadd.f32 %v1338, %v1293
        %v1340 = vadd.f32 %v1339, %v1295
        %v1341 = vadd.f32 %v1340, %v1297
        %v1342 = vadd.f32 %v1341, %v1299
        %v1343 = vadd.f32 %v1342, %v1301
        %v1344 = vadd.f32 %v1343, %v1303
        %v1345 = vadd.f32 %v1344, %v1305
        %v1346 = vadd.f32 %v1345, %v1307
        %v1347 = vadd.f32 %v1346, %v1309
        %v1348 = vadd.f32 %v1347, %v1311
        %v1349 = vadd.f32 %v1348, %v1313
        %v1350 = vrot.slane %v1349, 4
        %v1351 = vadd.f32 %v1349, %v1350
        %v1352 = vrot.slane %v1351, 2
        %v1353 = vadd.f32 %v1351, %v1352
        %v1354 = vrot.slane %v1353, 1
        %v1355 = vadd.f32 %v1353, %v1354
        %v1356 = vld [vmem:[#allocation2] sm:$0x1]
        %1358 = vset.pattern.permute.xlu0 0
        %1359 = vperm.xlu0 %1358, %v1356
        %v1360 = vpop.permute.xlu0 %1359
        %v1362 = vlaneseq
        %v1363 = vshrl.u32 %v1362, 7
        %v1364 = vsub.s32 0, %v1363
        %v1365 = vrot.slane %v1360, %v1364
        %v1366 = vadd.f32 %v1334, %v1365
        %v1367 = vadd.f32 %v1355, %v1365
        %v1368 = vmax.f32 %v1366, 0.0
        %v1369 = vmax.f32 %v1367, 0.0
        %v1372 = vcombine.low %v1368, %v1369
        %v1374 = vunpack.c.l.s4 1966171168
        %v1375 = vunpack.c.0.s8 %v1374
        %v1376 = vlaneseq
        %v1377 = vshrl.u32 %v1376, 7
        %v1378 = vsub.s32 %v1375, %v1377
        %v1379 = vrot.slane %v1372, %v1378
        %v1381 = vunpack.c.l.s4 1966171168
        %v1382 = vunpack.c.0.s8 %v1381
        %v1383 = vlaneseq
        %v1384 = vshrl.u32 %v1383, 7
        %v1385 = vsub.s32 %v1382, %v1384
        %v1386 = vrot.slane %v1379, %v1385
        %v1388 = vlaneseq
        %vm1389 = vcmp.ge.s32.totalorder %v1388, 0
        %vm1390 = vcmp.lt.s32.totalorder %v1388, 256
        %vm1391 = vmand %vm1389, %vm1390
        %1392 = vst.msk [vmem:[%s274] sm:$0x3] %vm1391, %v1386
        %s1393 = sand.u32 %s183, 1
        %s1394 = scalar_lea.sflag [#allocation4], %s1393
        %s1395 = sand.u32 %s183, 1
        %s1396 = smul.addr %s1395, 2
        %s1397 = scalar_lea.vmem [#allocation3], %s1396
        // Predicated region
        $region49: #{tpu_custom_call.1} parent=47 // pred_check
          %p1398 = pneg %p193
        $region50: #{tpu_custom_call.1} parent=47 // pred_check_branch
          %1400 = sbr.rel (%p1398) target = $region52
        $region51: #{tpu_custom_call.1} parent=47 // pred_region
          %s1401 = smul.u32 2, %s23
          %s1403 = ssub.s32 32, 32
          %1404 = vsyncadd %s1394, %s1403
          %s1405 = smul.addr %s1401, 16
          %s1406 = scalar_lea.hbm %s7, %s1405
          %s1408 = sshll.u32 %s1397, 4
          %s1409 = int_to_ptr.vmem [resolvable:$true] %s1408
          %1411 = dma.vmem_to_hbm [thread:$0]  %s1409, 32, %s1406, %s1394
        $region52: #{tpu_custom_call.1} parent=47 // pred_fallthru
          _
      $region48: #{tpu_custom_call.1} parent=5 // pred_fallthru
        _
      %p1412 = scmp.le.s32.totalorder 2, %s18
      // Predicated region
      $region53: #{tpu_custom_call.1} parent=5 // pred_check
        %p1413 = pneg %p1412
      $region54: #{tpu_custom_call.1} parent=5 // pred_check_branch
        %1415 = sbr.rel (%p1413) target = $region56
      $region55: #{tpu_custom_call.1} parent=5 // pred_region
        %s1416 = ssub.s32 %s18, 2
        // Predicated region
        $region57: #{tpu_custom_call.1} parent=55 // pred_check
          %p1417 = pneg %p199
        $region58: #{tpu_custom_call.1} parent=55 // pred_check_branch
          %1419 = sbr.rel (%p1417) target = $region60
        $region59: #{tpu_custom_call.1} parent=55 // pred_region
          %s1420 = sand.u32 %s184, 1
          %s1421 = scalar_lea.sflag [#allocation4], %s1420
          %s1422 = sand.u32 %s184, 1
          %s1423 = smul.addr %s1422, 2
          %s1424 = scalar_lea.vmem [#allocation3], %s1423
          %1425 = dma.done %s1421, 32
        $region60: #{tpu_custom_call.1} parent=55 // pred_fallthru
          _
      $region56: #{tpu_custom_call.1} parent=5 // pred_fallthru
        _
    $region6: #{tpu_custom_call.1} parent=1 // loop_footer
      %s22 = sadd.s32 1, %s18
    $region7: #{tpu_custom_call.1} parent=1 // loop_footer_branch
      %17 = sbr.rel target = $region3
    $region8: #{tpu_custom_call.1} parent=1 // loop_exit
      _
    %1426 = vsyncpa [#allocation4], 1
    %s1427 = scalar_lea.sflag [#allocation4], 1
    %1428 = vsyncpa %s1427, 1

</llo_original>
